<compile_context>
chip_gen: v5e
topology: v5e:2x2
jax: 0.10.0
libtpu: 0.0.40
codegen_flags: <defaults>
</compile_context>

<pallas_src>
import jax
import jax.numpy as jnp
from jax import lax
from jax.experimental import pallas as pl
from jax.experimental.pallas import tpu as pltpu

IN_DIM, H1_DIM, H2_DIM, OUT_DIM = 48, 36, 24, 16


def _encoder_kernel(x_ref, w1_ref, b1_ref, w2_ref, b2_ref, w3_ref, b3_ref, o_ref):
    """Fused feature-major encoder.

    x_ref:  [TB, 48]  batch tile (rows = samples; tail rows may be garbage).
    w*_ref: PyTorch-layout weights [out, in];  b*_ref: [out, 1] column biases.
    o_ref:  [16, TB]  feature-major output tile (batch on lanes -> dense store).
    """
    x = x_ref[...]                                                    # [TB, 48]

    # Layer 1: h1 = relu(W1 @ x^T + b1), computed by contracting the feature
    # axis of both operands (no explicit transpose; q @ k.T style).
    h = lax.dot_general(w1_ref[...], x, (((1,), (1,)), ((), ())),
                        preferred_element_type=jnp.float32)           # [36, TB]
    h = jnp.maximum(h + b1_ref[...], 0.0)

    # Layer 2: h2 = relu(W2 @ h1 + b2)
    h = jnp.dot(w2_ref[...], h, preferred_element_type=jnp.float32)   # [24, TB]
    h = jnp.maximum(h + b2_ref[...], 0.0)

    # Layer 3 (no activation): out = W3 @ h2 + b3
    h = jnp.dot(w3_ref[...], h, preferred_element_type=jnp.float32)   # [16, TB]
    o_ref[...] = (h + b3_ref[...]).astype(o_ref.dtype)


def _round_up(n, m):
    return ((n + m - 1) // m) * m


def autoencoder_forward(x, params, *, block_rows=4096):
    """x: [B, 48] float32.  params: dict of (W, b) per layer, W as [out, in]."""
    (w1, b1), (w2, b2), (w3, b3) = params["l1"], params["l2"], params["l3"]
    b1c, b2c, b3c = b1.reshape(-1, 1), b2.reshape(-1, 1), b3.reshape(-1, 1)

    B = x.shape[0]
    # Batch tile lives on the lane axis of the output -> must be a multiple of
    # 128.  Cap at ~B/2 so the grid has >= 2 steps (v7x megacore) when possible.
    TB = min(_round_up(block_rows, 128),
             _round_up(B, 128),
             max(128, _round_up(-(-B // 2), 128)))
    grid = (pl.cdiv(B, TB),)

    # Constant index maps -> weights/biases stay VMEM-resident across tiles.
    const = lambda a: pl.BlockSpec(a.shape, lambda i: (0, 0))

    out_t = pl.pallas_call(
        _encoder_kernel,
        out_shape=jax.ShapeDtypeStruct((OUT_DIM, B), x.dtype),
        grid=grid,
        in_specs=[
            pl.BlockSpec((TB, IN_DIM), lambda i: (i, 0)),   # batch tile
            const(w1), const(b1c),
            const(w2), const(b2c),
            const(w3), const(b3c),
        ],
        out_specs=pl.BlockSpec((OUT_DIM, TB), lambda i: (0, i)),  # lane-dense
        compiler_params=pltpu.CompilerParams(
            dimension_semantics=("parallel",),
            vmem_limit_bytes=32 * 1024 * 1024,
        ),
    )(x, w1, b1c, w2, b2c, w3, b3c)

    # Feature-major [16, B] -> PyTorch layout [B, 16].
    return out_t.T


def init_params(key):
    """Deterministic init mimicking PyTorch Linear default (uniform +/- 1/sqrt(fan_in))."""
    dims = [(IN_DIM, H1_DIM), (H1_DIM, H2_DIM), (H2_DIM, OUT_DIM)]
    params = {}
    for i, (fan_in, fan_out) in enumerate(dims, start=1):
        key, kw, kb = jax.random.split(key, 3)
        bound = 1.0 / jnp.sqrt(jnp.float32(fan_in))
        w = jax.random.uniform(kw, (fan_out, fan_in), jnp.float32, -bound, bound)
        b = jax.random.uniform(kb, (fan_out,), jnp.float32, -bound, bound)
        params[f"l{i}"] = (w, b)
    return params


def reference_forward(x, params):
    (w1, b1), (w2, b2), (w3, b3) = params["l1"], params["l2"], params["l3"]
    h = jnp.maximum(x @ w1.T + b1, 0.0)
    h = jnp.maximum(h @ w2.T + b2, 0.0)
    return h @ w3.T + b3


if __name__ == "__main__":
    key = jax.random.PRNGKey(0)
    kp, kx1, kx2, kx3 = jax.random.split(key, 4)
    params = init_params(kp)
    fwd = jax.jit(autoencoder_forward)

    # Small even batch (single grid step, masked tail inside the 128-wide tile).
    x1 = jax.random.normal(kx1, (8, IN_DIM), jnp.float32)
    y1 = jax.block_until_ready(fwd(x1, params))
    assert y1.shape == (8, OUT_DIM)
    assert jnp.allclose(y1, reference_forward(x1, params), atol=1e-4, rtol=1e-4)

    # Batch not a multiple of 8/128 -> exercises the ragged-tail masking path.
    x2 = jax.random.normal(kx2, (13, IN_DIM), jnp.float32)
    y2 = jax.block_until_ready(fwd(x2, params))
    assert y2.shape == (13, OUT_DIM)
    assert jnp.allclose(y2, reference_forward(x2, params), atol=1e-4, rtol=1e-4)

    # Multi-step grid (>= 2 tiles -> megacore sharding path on v7x) + ragged tail.
    x3 = jax.random.normal(kx3, (200, IN_DIM), jnp.float32)
    y3 = jax.block_until_ready(fwd(x3, params))
    assert y3.shape == (200, OUT_DIM)
    assert jnp.allclose(y3, reference_forward(x3, params), atol=1e-4, rtol=1e-4)

    print("KERNEL_OK")
</pallas_src>

<mosaic_0001>
module attributes {stable_mosaic.version = 11 : i64} {
  func.func @_encoder_kernel(%arg0: i32, %arg1: memref<128x48xf32, #tpu.memory_space<vmem>>, %arg2: memref<36x48xf32, #tpu.memory_space<vmem>>, %arg3: memref<36x1xf32, #tpu.memory_space<vmem>>, %arg4: memref<24x36xf32, #tpu.memory_space<vmem>>, %arg5: memref<24x1xf32, #tpu.memory_space<vmem>>, %arg6: memref<16x24xf32, #tpu.memory_space<vmem>>, %arg7: memref<16x1xf32, #tpu.memory_space<vmem>>, %arg8: memref<16x128xf32, #tpu.memory_space<vmem>>) attributes {dimension_semantics = [#tpu.dimension_semantics<parallel>], iteration_bounds = array<i64: 1>, scalar_prefetch = 0 : i64, scratch_operands = 0 : i64, tpu.core_type = #tpu.core_type<tc>, window_params = [{transform_indices = @transform_0, window_bounds = array<i64: 128, 48>}, {pipeline_mode = #tpu.pipeline_mode<synchronous>, transform_indices = @transform_1, window_bounds = array<i64: 36, 48>}, {pipeline_mode = #tpu.pipeline_mode<synchronous>, transform_indices = @transform_2, window_bounds = array<i64: 36, 1>}, {pipeline_mode = #tpu.pipeline_mode<synchronous>, transform_indices = @transform_3, window_bounds = array<i64: 24, 36>}, {pipeline_mode = #tpu.pipeline_mode<synchronous>, transform_indices = @transform_4, window_bounds = array<i64: 24, 1>}, {pipeline_mode = #tpu.pipeline_mode<synchronous>, transform_indices = @transform_5, window_bounds = array<i64: 16, 24>}, {pipeline_mode = #tpu.pipeline_mode<synchronous>, transform_indices = @transform_6, window_bounds = array<i64: 16, 1>}, {transform_indices = @transform_7, window_bounds = array<i64: 16, 128>}]} {
    %c0 = arith.constant 0 : index
    %c0_0 = arith.constant 0 : index
    %0 = vector.load %arg1[%c0, %c0_0] : memref<128x48xf32, #tpu.memory_space<vmem>>, vector<128x48xf32>
    %c0_1 = arith.constant 0 : index
    %c0_2 = arith.constant 0 : index
    %1 = vector.load %arg2[%c0_1, %c0_2] : memref<36x48xf32, #tpu.memory_space<vmem>>, vector<36x48xf32>
    %cst = arith.constant dense<0.000000e+00> : vector<36x128xf32>
    %2 = tpu.matmul %1, %0, %cst {dimension_numbers = #tpu.dot_dimension_numbers<[1], [1], [0], [0], [0, 0, 1, 0], [], []>} : vector<36x48xf32>, vector<128x48xf32>, vector<36x128xf32> -> vector<36x128xf32>
    %c0_3 = arith.constant 0 : index
    %c0_4 = arith.constant 0 : index
    %3 = vector.load %arg3[%c0_3, %c0_4] : memref<36x1xf32, #tpu.memory_space<vmem>>, vector<36x1xf32>
    %4 = vector.broadcast %3 : vector<36x1xf32> to vector<36x128xf32>
    %5 = arith.addf %2, %4 : vector<36x128xf32>
    %cst_5 = arith.constant 0.000000e+00 : f32
    %6 = vector.broadcast %cst_5 : f32 to vector<36x128xf32>
    %7 = arith.maximumf %5, %6 : vector<36x128xf32>
    %c0_6 = arith.constant 0 : index
    %c0_7 = arith.constant 0 : index
    %8 = vector.load %arg4[%c0_6, %c0_7] : memref<24x36xf32, #tpu.memory_space<vmem>>, vector<24x36xf32>
    %cst_8 = arith.constant dense<0.000000e+00> : vector<24x128xf32>
    %9 = tpu.matmul %8, %7, %cst_8 {dimension_numbers = #tpu.dot_dimension_numbers<[1], [0], [0], [1], [0, 0, 1, 1], [], []>} : vector<24x36xf32>, vector<36x128xf32>, vector<24x128xf32> -> vector<24x128xf32>
    %c0_9 = arith.constant 0 : index
    %c0_10 = arith.constant 0 : index
    %10 = vector.load %arg5[%c0_9, %c0_10] : memref<24x1xf32, #tpu.memory_space<vmem>>, vector<24x1xf32>
    %11 = vector.broadcast %10 : vector<24x1xf32> to vector<24x128xf32>
    %12 = arith.addf %9, %11 : vector<24x128xf32>
    %cst_11 = arith.constant 0.000000e+00 : f32
    %13 = vector.broadcast %cst_11 : f32 to vector<24x128xf32>
    %14 = arith.maximumf %12, %13 : vector<24x128xf32>
    %c0_12 = arith.constant 0 : index
    %c0_13 = arith.constant 0 : index
    %15 = vector.load %arg6[%c0_12, %c0_13] : memref<16x24xf32, #tpu.memory_space<vmem>>, vector<16x24xf32>
    %cst_14 = arith.constant dense<0.000000e+00> : vector<16x128xf32>
    %16 = tpu.matmul %15, %14, %cst_14 {dimension_numbers = #tpu.dot_dimension_numbers<[1], [0], [0], [1], [0, 0, 1, 1], [], []>} : vector<16x24xf32>, vector<24x128xf32>, vector<16x128xf32> -> vector<16x128xf32>
    %c0_15 = arith.constant 0 : index
    %c0_16 = arith.constant 0 : index
    %17 = vector.load %arg7[%c0_15, %c0_16] : memref<16x1xf32, #tpu.memory_space<vmem>>, vector<16x1xf32>
    %18 = vector.broadcast %17 : vector<16x1xf32> to vector<16x128xf32>
    %19 = arith.addf %16, %18 : vector<16x128xf32>
    %c0_17 = arith.constant 0 : index
    %c0_18 = arith.constant 0 : index
    %20 = vector.load %arg8[%c0_17, %c0_18] : memref<16x128xf32, #tpu.memory_space<vmem>>, vector<16x128xf32>
    tpu.vector_store %arg8[%c0_17, %c0_18], %19 {strides = array<i32>} : memref<16x128xf32, #tpu.memory_space<vmem>>, vector<16x128xf32>,
    return
  }
  func.func @transform_0(%arg0: i32) -> (i32, i32) {
    %c0_i32 = arith.constant 0 : i32
    %c0_i32_0 = arith.constant 0 : i32
    return %arg0, %c0_i32 : i32, i32
  }
  func.func @transform_1(%arg0: i32) -> (i32, i32) {
    %c0_i32 = arith.constant 0 : i32
    %c0_i32_0 = arith.constant 0 : i32
    %c0_i32_1 = arith.constant 0 : i32
    return %c0_i32, %c0_i32_0 : i32, i32
  }
  func.func @transform_2(%arg0: i32) -> (i32, i32) {
    %c0_i32 = arith.constant 0 : i32
    %c0_i32_0 = arith.constant 0 : i32
    %c0_i32_1 = arith.constant 0 : i32
    return %c0_i32, %c0_i32_0 : i32, i32
  }
  func.func @transform_3(%arg0: i32) -> (i32, i32) {
    %c0_i32 = arith.constant 0 : i32
    %c0_i32_0 = arith.constant 0 : i32
    %c0_i32_1 = arith.constant 0 : i32
    return %c0_i32, %c0_i32_0 : i32, i32
  }
  func.func @transform_4(%arg0: i32) -> (i32, i32) {
    %c0_i32 = arith.constant 0 : i32
    %c0_i32_0 = arith.constant 0 : i32
    %c0_i32_1 = arith.constant 0 : i32
    return %c0_i32, %c0_i32_0 : i32, i32
  }
  func.func @transform_5(%arg0: i32) -> (i32, i32) {
    %c0_i32 = arith.constant 0 : i32
    %c0_i32_0 = arith.constant 0 : i32
    %c0_i32_1 = arith.constant 0 : i32
    return %c0_i32, %c0_i32_0 : i32, i32
  }
  func.func @transform_6(%arg0: i32) -> (i32, i32) {
    %c0_i32 = arith.constant 0 : i32
    %c0_i32_0 = arith.constant 0 : i32
    %c0_i32_1 = arith.constant 0 : i32
    return %c0_i32, %c0_i32_0 : i32, i32
  }
  func.func @transform_7(%arg0: i32) -> (i32, i32) {
    %c0_i32 = arith.constant 0 : i32
    %c0_i32_0 = arith.constant 0 : i32
    return %c0_i32, %arg0 : i32, i32
  }
}

</mosaic_0001>

<llo_original>
// kernel: autoencoder_forward.1
$region0: #{autoencoder_forward.1}
  #allocation0 [shape = 'u32[]', space=smem, size = 0x4, offset = 0x4, fixed_abs, tag = 'smem constant byte address 0x4 - core index']
  #allocation1 [shape = 'u32[72,128]{1,0:T(1,128)}', space=vmem, size = 0x9000, scoped, tag = 'internal scratch']
  %s0 = inlined_call_operand.hbm [shape: f32[8,48], index: 0, kind: input, shape index: {}]
  %s1 = inlined_call_operand.vmem [shape: f32[36,48], index: 1, kind: input, shape index: {}]
  %s2 = inlined_call_operand.vmem [shape: f32[36,1], index: 2, kind: input, shape index: {}]
  %s3 = inlined_call_operand.vmem [shape: f32[24,36], index: 3, kind: input, shape index: {}]
  %s4 = inlined_call_operand.vmem [shape: f32[24,1], index: 4, kind: input, shape index: {}]
  %s5 = inlined_call_operand.vmem [shape: f32[16,24], index: 5, kind: input, shape index: {}]
  %s6 = inlined_call_operand.vmem [shape: f32[16,1], index: 6, kind: input, shape index: {}]
  %s7 = inlined_call_operand.vmem [shape: f32[16,8], index: 7, kind: output, shape index: {}]
  %s8 = sld [smem:[#allocation0]]
  $region42: #{autoencoder_forward.1} parent=0
    _
  %s10 = ssub.s32 1, %s8
  %s11 = scalar_select 0, %s10, %s8
  $region1: #{autoencoder_forward.1} parent=0
    #allocation2 [shape = 'u8[65536]{0}', space=vmem, size = 0x10000, scoped, tag = 'input window, operand 0, single buffered']
    #allocation3 [shape = 's32[1]{0}', space=sflag, size = 0x4, scoped, tag = 'scoped memory for autoencoder_forward.1']
    %12 = vsyncpa [#allocation3], 0
    // Predicated region
    $region2: #{autoencoder_forward.1} parent=1 // pred_check
      _
    $region3: #{autoencoder_forward.1} parent=1 // pred_check_branch
      %14 = sbr.rel (0) target = $region5
    $region4: #{autoencoder_forward.1} parent=1 // pred_region
      %16 = vsyncadd [#allocation3], 1920
      %s17 = sshll.u32 %s0, 4
      %s18 = int_to_ptr.hbm [resolvable:$true] %s17
      %s19 = sshll.u32 [#allocation2], 4
      %s20 = int_to_ptr.vmem [resolvable:$true] %s19
      %25 = dma.hbm_to_vmem [thread:$0]  %s18, 128, %s20, [#allocation3], 128, 128, 8
    $region5: #{autoencoder_forward.1} parent=1 // pred_fallthru
      _
    // Predicated region
    $region6: #{autoencoder_forward.1} parent=1 // pred_check
      _
    $region7: #{autoencoder_forward.1} parent=1 // pred_check_branch
      %27 = sbr.rel (0) target = $region9
    $region8: #{autoencoder_forward.1} parent=1 // pred_region
      _
    $region9: #{autoencoder_forward.1} parent=1 // pred_fallthru
      _
    // Predicated region
    $region10: #{autoencoder_forward.1} parent=1 // pred_check
      _
    $region11: #{autoencoder_forward.1} parent=1 // pred_check_branch
      %29 = sbr.rel (0) target = $region13
    $region12: #{autoencoder_forward.1} parent=1 // pred_region
      _
    $region13: #{autoencoder_forward.1} parent=1 // pred_fallthru
      _
    // Predicated region
    $region14: #{autoencoder_forward.1} parent=1 // pred_check
      _
    $region15: #{autoencoder_forward.1} parent=1 // pred_check_branch
      %31 = sbr.rel (0) target = $region17
    $region16: #{autoencoder_forward.1} parent=1 // pred_region
      _
    $region17: #{autoencoder_forward.1} parent=1 // pred_fallthru
      _
    // Predicated region
    $region18: #{autoencoder_forward.1} parent=1 // pred_check
      _
    $region19: #{autoencoder_forward.1} parent=1 // pred_check_branch
      %33 = sbr.rel (0) target = $region21
    $region20: #{autoencoder_forward.1} parent=1 // pred_region
      _
    $region21: #{autoencoder_forward.1} parent=1 // pred_fallthru
      _
    // Predicated region
    $region22: #{autoencoder_forward.1} parent=1 // pred_check
      _
    $region23: #{autoencoder_forward.1} parent=1 // pred_check_branch
      %35 = sbr.rel (0) target = $region25
    $region24: #{autoencoder_forward.1} parent=1 // pred_region
      _
    $region25: #{autoencoder_forward.1} parent=1 // pred_fallthru
      _
    // Predicated region
    $region26: #{autoencoder_forward.1} parent=1 // pred_check
      _
    $region27: #{autoencoder_forward.1} parent=1 // pred_check_branch
      %37 = sbr.rel (0) target = $region29
    $region28: #{autoencoder_forward.1} parent=1 // pred_region
      _
    $region29: #{autoencoder_forward.1} parent=1 // pred_fallthru
      _
    // Predicated region
    $region30: #{autoencoder_forward.1} parent=1 // pred_check
      _
    $region31: #{autoencoder_forward.1} parent=1 // pred_check_branch
      %39 = sbr.rel (0) target = $region33
    $region32: #{autoencoder_forward.1} parent=1 // pred_region
      %41 = dma.done [#allocation3], 2048
    $region33: #{autoencoder_forward.1} parent=1 // pred_fallthru
      _
    %v42 = vld [vmem:[#allocation2] sm:$0xff]
    %v43 = vld [vmem:[#allocation2 + $0x8] sm:$0xff]
    %v44 = vld [vmem:[#allocation2 + $0x10] sm:$0xff]
    %v45 = vld [vmem:[#allocation2 + $0x18] sm:$0xff]
    %v46 = vld [vmem:[#allocation2 + $0x20] sm:$0xff]
    %v47 = vld [vmem:[#allocation2 + $0x28] sm:$0xff]
    %v48 = vld [vmem:[#allocation2 + $0x30] sm:$0xff]
    %v49 = vld [vmem:[#allocation2 + $0x38] sm:$0xff]
    %v50 = vld [vmem:[#allocation2 + $0x40] sm:$0xff]
    %v51 = vld [vmem:[#allocation2 + $0x48] sm:$0xff]
    %v52 = vld [vmem:[#allocation2 + $0x50] sm:$0xff]
    %v53 = vld [vmem:[#allocation2 + $0x58] sm:$0xff]
    %v54 = vld [vmem:[#allocation2 + $0x60] sm:$0xff]
    %v55 = vld [vmem:[#allocation2 + $0x68] sm:$0xff]
    %v56 = vld [vmem:[#allocation2 + $0x70] sm:$0xff]
    %v57 = vld [vmem:[#allocation2 + $0x78] sm:$0xff]
    %v58 = vld [vmem:[%s1] sm:$0xff]
    %v59 = vld [vmem:[%s1 + $0x8] sm:$0xff]
    %v60 = vld [vmem:[%s1 + $0x10] sm:$0xff]
    %v61 = vld [vmem:[%s1 + $0x18] sm:$0xff]
    %v62 = vld [vmem:[%s1 + $0x20] sm:$0xf]
    %v63 = vld [vmem:[%s2] sm:$0xff]
    %v64 = vld [vmem:[%s2 + $0x8] sm:$0xff]
    %v65 = vld [vmem:[%s2 + $0x10] sm:$0xff]
    %v66 = vld [vmem:[%s2 + $0x18] sm:$0xff]
    %v67 = vld [vmem:[%s2 + $0x20] sm:$0xf]
    %69 = vset.pattern.permute.xlu0 0
    %70 = vperm.xlu0 %69, %v63
    %v71 = vpop.permute.xlu0 %70
    %74 = vset.pattern.permute.xlu0 0
    %75 = vperm.xlu0 %74, %v64
    %v76 = vpop.permute.xlu0 %75
    %79 = vset.pattern.permute.xlu0 0
    %80 = vperm.xlu0 %79, %v65
    %v81 = vpop.permute.xlu0 %80
    %84 = vset.pattern.permute.xlu0 0
    %85 = vperm.xlu0 %84, %v66
    %v86 = vpop.permute.xlu0 %85
    %89 = vset.pattern.permute.xlu0 0
    %90 = vperm.xlu0 %89, %v67
    %v91 = vpop.permute.xlu0 %90
    %vm93 = vcmask 392192
    %v95 = vsel %vm93, %v58, 0
    %v98 = vsel %vm93, %v59, 0
    %v101 = vsel %vm93, %v60, 0
    %v104 = vsel %vm93, %v61, 0
    %v107 = vsel %vm93, %v62, 0
    %v110 = vsel %vm93, %v42, 0
    %v113 = vsel %vm93, %v43, 0
    %v116 = vsel %vm93, %v44, 0
    %v119 = vsel %vm93, %v45, 0
    %v122 = vsel %vm93, %v46, 0
    %v125 = vsel %vm93, %v47, 0
    %v128 = vsel %vm93, %v48, 0
    %v131 = vsel %vm93, %v49, 0
    %v134 = vsel %vm93, %v50, 0
    %v137 = vsel %vm93, %v51, 0
    %v140 = vsel %vm93, %v52, 0
    %v143 = vsel %vm93, %v53, 0
    %v146 = vsel %vm93, %v54, 0
    %v149 = vsel %vm93, %v55, 0
    %v152 = vsel %vm93, %v56, 0
    %v155 = vsel %vm93, %v57, 0
    %157 = vmatpush.xpose.msra.mxu0 %v155
    %158 = vmatpush.xpose.msra.mxu0 %v152
    %159 = vmatpush.xpose.msra.mxu0 %v149
    %160 = vmatpush.xpose.msra.mxu0 %v146
    %161 = vmatpush.xpose.msra.mxu0 %v143
    %162 = vmatpush.xpose.msra.mxu0 %v140
    %163 = vmatpush.xpose.msra.mxu0 %v137
    %164 = vmatpush.xpose.msra.mxu0 %v134
    %165 = vmatpush.xpose.msra.mxu0 %v131
    %166 = vmatpush.xpose.msra.mxu0 %v128
    %167 = vmatpush.xpose.msra.mxu0 %v125
    %168 = vmatpush.xpose.msra.mxu0 %v122
    %169 = vmatpush.xpose.msra.mxu0 %v119
    %170 = vmatpush.xpose.msra.mxu0 %v116
    %171 = vmatpush.xpose.msra.mxu0 %v113
    %172 = vmatpush.xpose.msra.mxu0 %v110
    %173 = vmatmul.f32.gmra.mxu0 %v95
    %v174 = vpop.f32.mrf.mxu0
    %v175 = vadd.f32 %v71, %v174
    %176 = vmatmul.f32.gmra.mxu0 %v98
    %v177 = vpop.f32.mrf.mxu0
    %v178 = vadd.f32 %v76, %v177
    %179 = vmatmul.f32.gmra.mxu0 %v101
    %v180 = vpop.f32.mrf.mxu0
    %v181 = vadd.f32 %v81, %v180
    %182 = vmatmul.f32.gmra.mxu0 %v104
    %v183 = vpop.f32.mrf.mxu0
    %v184 = vadd.f32 %v86, %v183
    %185 = vmatmul.f32.gmra.mxu0 %v107
    %v186 = vpop.f32.mrf.mxu0
    %v187 = vadd.f32 %v91, %v186
    %188 = vdwg.mxu0
    %v189 = vmax.f32 %v175, 0.0
    %v190 = vmax.f32 %v178, 0.0
    %v191 = vmax.f32 %v181, 0.0
    %v192 = vmax.f32 %v184, 0.0
    %v193 = vmax.f32 %v187, 0.0
    %v194 = vld [vmem:[%s3] sm:$0xff]
    %v195 = vld [vmem:[%s3 + $0x8] sm:$0xff]
    %v196 = vld [vmem:[%s3 + $0x10] sm:$0xff]
    %v197 = vld [vmem:[%s4] sm:$0xff]
    %v198 = vld [vmem:[%s4 + $0x8] sm:$0xff]
    %v199 = vld [vmem:[%s4 + $0x10] sm:$0xff]
    %201 = vset.pattern.permute.xlu0 0
    %202 = vperm.xlu0 %201, %v197
    %v203 = vpop.permute.xlu0 %202
    %206 = vset.pattern.permute.xlu0 0
    %207 = vperm.xlu0 %206, %v198
    %v208 = vpop.permute.xlu0 %207
    %211 = vset.pattern.permute.xlu0 0
    %212 = vperm.xlu0 %211, %v199
    %v213 = vpop.permute.xlu0 %212
    %vm215 = vcmask 293888
    %v217 = vsel %vm215, %v194, 0
    %v220 = vsel %vm215, %v195, 0
    %v223 = vsel %vm215, %v196, 0
    %vm225 = vcmask 1043456
    %v227 = vsel %vm225, %v193, 0
    %229 = vmatpush.msra.mxu0 0.0
    %230 = vmatpush.msra.mxu0 0.0
    %231 = vmatpush.msra.mxu0 0.0
    %232 = vmatpush.msra.mxu0 0.0
    %233 = vmatpush.msra.mxu0 0.0
    %234 = vmatpush.msra.mxu0 0.0
    %235 = vmatpush.msra.mxu0 0.0
    %236 = vmatpush.msra.mxu0 0.0
    %237 = vmatpush.msra.mxu0 0.0
    %238 = vmatpush.msra.mxu0 0.0
    %239 = vmatpush.msra.mxu0 0.0
    %240 = vmatpush.msra.mxu0 %v227
    %241 = vmatpush.msra.mxu0 %v192
    %242 = vmatpush.msra.mxu0 %v191
    %243 = vmatpush.msra.mxu0 %v190
    %244 = vmatpush.msra.mxu0 %v189
    %245 = vmatmul.f32.gmra.mxu0 %v217
    %v246 = vpop.f32.mrf.mxu0
    %v247 = vadd.f32 %v203, %v246
    %248 = vmatmul.f32.gmra.mxu0 %v220
    %v249 = vpop.f32.mrf.mxu0
    %v250 = vadd.f32 %v208, %v249
    %251 = vmatmul.f32.gmra.mxu0 %v223
    %v252 = vpop.f32.mrf.mxu0
    %v253 = vadd.f32 %v213, %v252
    %254 = vdwg.mxu0
    %v255 = vmax.f32 %v247, 0.0
    %v256 = vmax.f32 %v250, 0.0
    %v257 = vmax.f32 %v253, 0.0
    %v258 = vld [vmem:[%s5] sm:$0xff]
    %v259 = vld [vmem:[%s5 + $0x8] sm:$0xff]
    %v260 = vld [vmem:[%s6] sm:$0xff]
    %v261 = vld [vmem:[%s6 + $0x8] sm:$0xff]
    %263 = vset.pattern.permute.xlu0 0
    %264 = vperm.xlu0 %263, %v260
    %v265 = vpop.permute.xlu0 %264
    %268 = vset.pattern.permute.xlu0 0
    %269 = vperm.xlu0 %268, %v261
    %v270 = vpop.permute.xlu0 %269
    %vm272 = vcmask 195584
    %v274 = vsel %vm272, %v258, 0
    %v277 = vsel %vm272, %v259, 0
    %279 = vmatpush.msra.mxu0 0.0
    %280 = vmatpush.msra.mxu0 0.0
    %281 = vmatpush.msra.mxu0 0.0
    %282 = vmatpush.msra.mxu0 0.0
    %283 = vmatpush.msra.mxu0 0.0
    %284 = vmatpush.msra.mxu0 0.0
    %285 = vmatpush.msra.mxu0 0.0
    %286 = vmatpush.msra.mxu0 0.0
    %287 = vmatpush.msra.mxu0 0.0
    %288 = vmatpush.msra.mxu0 0.0
    %289 = vmatpush.msra.mxu0 0.0
    %290 = vmatpush.msra.mxu0 0.0
    %291 = vmatpush.msra.mxu0 0.0
    %292 = vmatpush.msra.mxu0 %v257
    %293 = vmatpush.msra.mxu0 %v256
    %294 = vmatpush.msra.mxu0 %v255
    %295 = vmatmul.f32.gmra.mxu0 %v274
    %v296 = vpop.f32.mrf.mxu0
    %v297 = vadd.f32 %v265, %v296
    %298 = vmatmul.f32.gmra.mxu0 %v277
    %v299 = vpop.f32.mrf.mxu0
    %v300 = vadd.f32 %v270, %v299
    %301 = vdwg.mxu0
    %302 = vst [vmem:[%s7] sm:$0xff] %v297
    %303 = vst [vmem:[%s7 + $0x8] sm:$0xff] %v300
    // Predicated region
    $region34: #{autoencoder_forward.1} parent=1 // pred_check
      _
    $region35: #{autoencoder_forward.1} parent=1 // pred_check_branch
      %305 = sbr.rel (0) target = $region37
    $region36: #{autoencoder_forward.1} parent=1 // pred_region
      _
    $region37: #{autoencoder_forward.1} parent=1 // pred_fallthru
      _
    // Predicated region
    $region38: #{autoencoder_forward.1} parent=1 // pred_check
      _
    $region39: #{autoencoder_forward.1} parent=1 // pred_check_branch
      %307 = sbr.rel (0) target = $region41
    $region40: #{autoencoder_forward.1} parent=1 // pred_region
      _
    $region41: #{autoencoder_forward.1} parent=1 // pred_fallthru
      _
    %308 = vsyncpa [#allocation3], 1

</llo_original>
